<compile_context>
chip_gen: v7x
topology: tpu7x:2x2x1
jax: 0.10.0
libtpu: 0.0.40
codegen_flags: <defaults>
</compile_context>

<pallas_src>
import functools

import jax
import jax.numpy as jnp
from jax.experimental import pallas as pl
from jax.experimental.pallas import tpu as pltpu

_LANE = 128          # lane width: hidden/class dims padded to a multiple of this
_SUBLANE_BF16 = 16   # bf16 native sublane tile: batch tiles rounded to this


def _round_up(x, m):
    return ((x + m - 1) // m) * m


def _model_full_kernel(x_ref, w1_ref, b1_ref, w2_ref, b2_ref,
                       w3_ref, b3_ref, wc_ref, bc_ref, out_ref):
    """Fused SimCLR-head MLP + linear classifier for one batch tile.

    MXU operands (x, W) in bf16; accumulation and elementwise (bias add, ReLU) in f32.
    """
    x = x_ref[...].astype(jnp.bfloat16)      # x arrives f32 at true d_in; cast here
    # Hoist bias loads once per invocation.
    b1 = b1_ref[...]
    b2 = b2_ref[...]
    b3 = b3_ref[...]
    bc = bc_ref[...]

    # Layer 1: Linear(d_in, h1) + ReLU
    h1 = jnp.dot(x, w1_ref[...], preferred_element_type=jnp.float32) + b1
    h1 = jnp.maximum(h1, 0.0).astype(jnp.bfloat16)

    # Layer 2: Linear(h1, h2) + ReLU
    h2 = jnp.dot(h1, w2_ref[...], preferred_element_type=jnp.float32) + b2
    h2 = jnp.maximum(h2, 0.0).astype(jnp.bfloat16)

    # Layer 3: Linear(h2, h3)  (SimCLR head output, no activation)
    h3 = jnp.dot(h2, w3_ref[...], preferred_element_type=jnp.float32) + b3
    h3 = h3.astype(jnp.bfloat16)

    # Classifier: Linear(h3, num_classes)
    logits = jnp.dot(h3, wc_ref[...], preferred_element_type=jnp.float32) + bc
    out_ref[...] = logits.astype(out_ref.dtype)


@functools.partial(jax.jit,
                   static_argnames=("num_classes", "batch_tile", "weight_buffer_count"))
def model_full_forward(x, params, *, num_classes, batch_tile=1024,
                       weight_buffer_count=None):
    """Runs the fused Model_Full forward pass via pallas_call.

    x: (B, d_in) float32 (unpadded, fed to the kernel as-is).
    params: dict from pack_params() (weights bf16 (in, out), biases f32 (1, out);
            all dims except w1's IN dim lane-padded to multiples of 128).
    weight_buffer_count: pass 1 on v7x with very wide hiddens to single-buffer the
            grid-constant weight/bias blocks (halves their VMEM footprint).
    Returns (B, num_classes) float32.
    """
    w1, b1 = params["w1"], params["b1"]
    w2, b2 = params["w2"], params["b2"]
    w3, b3 = params["w3"], params["b3"]
    wc, bc = params["wc"], params["bc"]

    B, d_in = x.shape
    h1_p = w1.shape[1]
    h2_p = w2.shape[1]
    h3_p = w3.shape[1]
    nc_p = wc.shape[1]

    batch_tile = max(_SUBLANE_BF16, _round_up(batch_tile, _SUBLANE_BF16))

    # Pick the batch tile:
    #  * as large as batch_tile (grid-step overhead dominates this kernel),
    #  * rounded to the bf16 sublane tile (16),
    #  * at least 2 grid steps once B >= 32 so the "parallel" batch axis shards
    #    across both TensorCores on v7x (negligible cost on single-TC v5e/v6e),
    #  * never larger than B itself: a block equal to the full array dim is always
    #    legal, so ragged / tiny batches need no padding (Pallas masks the partial
    #    last block on writeback).
    candidates = [batch_tile, _round_up(B, _SUBLANE_BF16), B]
    if B >= 2 * _SUBLANE_BF16:
        candidates.append(_round_up(pl.cdiv(B, 2), _SUBLANE_BF16))
    tile_b = min(candidates)
    grid = (pl.cdiv(B, tile_b),)

    # Whole-tensor-resident blocks for weights/biases (same block every grid step).
    pm = ({} if weight_buffer_count is None
          else {"pipeline_mode": pl.Buffered(weight_buffer_count)})

    def full(shape):
        return pl.BlockSpec(shape, lambda i: (0,) * len(shape), **pm)

    n_rows = grid[0] * tile_b
    flops = 2 * n_rows * (d_in * h1_p + h1_p * h2_p + h2_p * h3_p + h3_p * nc_p)
    bytes_accessed = (
        B * d_in * 4                                           # x (f32, true d_in)
        + (w1.size + w2.size + w3.size + wc.size) * 2          # weights (bf16)
        + (b1.size + b2.size + b3.size + bc.size) * 4          # biases (f32)
        + B * nc_p * 4                                         # output (f32)
    )

    out_p = pl.pallas_call(
        _model_full_kernel,
        out_shape=jax.ShapeDtypeStruct((B, nc_p), jnp.float32),
        grid_spec=pltpu.PrefetchScalarGridSpec(
            num_scalar_prefetch=0,
            grid=grid,
            in_specs=[
                pl.BlockSpec((tile_b, d_in), lambda i: (i, 0)),     # x tile (true d_in)
                full(w1.shape), full(b1.shape),                     # layer 1
                full(w2.shape), full(b2.shape),                     # layer 2
                full(w3.shape), full(b3.shape),                     # layer 3
                full(wc.shape), full(bc.shape),                     # classifier
            ],
            out_specs=pl.BlockSpec((tile_b, nc_p), lambda i: (i, 0)),
        ),
        compiler_params=pltpu.CompilerParams(
            dimension_semantics=("parallel",),
            vmem_limit_bytes=48 * 1024 * 1024),
        cost_estimate=pl.CostEstimate(
            flops=flops, transcendentals=0, bytes_accessed=bytes_accessed),
    )(x, w1, b1, w2, b2, w3, b3, wc, bc)

    # Slice off the lane padding of the class dimension (batch is already exact).
    return out_p[:, :num_classes]


def init_params(key, d_in, hidden_1, hidden_2, hidden_3, num_classes):
    """PyTorch-style init: U(-1/sqrt(fan_in), 1/sqrt(fan_in)), f32, unpadded.

    Weights are stored transposed as (in, out) for the x @ W kernel layout.
    """
    def linear(k, fan_in, fan_out):
        kw, kb = jax.random.split(k)
        bound = 1.0 / jnp.sqrt(fan_in)
        w = jax.random.uniform(kw, (fan_in, fan_out), jnp.float32, -bound, bound)
        b = jax.random.uniform(kb, (1, fan_out), jnp.float32, -bound, bound)
        return w, b

    k1, k2, k3, kc = jax.random.split(key, 4)
    w1, b1 = linear(k1, d_in, hidden_1)
    w2, b2 = linear(k2, hidden_1, hidden_2)
    w3, b3 = linear(k3, hidden_2, hidden_3)
    wc, bc = linear(kc, hidden_3, num_classes)
    return dict(w1=w1, b1=b1, w2=w2, b2=b2, w3=w3, b3=b3, wc=wc, bc=bc)


def pack_params(p):
    """Lane-pad hidden/class dims to multiples of 128 and cast weights to bf16.

    w1's IN dim stays the true d_in (its block equals the full array shape, so no
    (8,128) constraint applies and x needs no feature-dim padding).  Zero padding is
    exact: padded hidden units contribute 0 (bias pad 0, ReLU(0)=0); padded class
    columns are sliced off in the wrapper.
    """
    def pad_w(w, pad_in=True):
        i, o = w.shape
        ip = _round_up(i, _LANE) if pad_in else i
        op = _round_up(o, _LANE)
        return jnp.pad(w, ((0, ip - i), (0, op - o))).astype(jnp.bfloat16)

    def pad_b(b):
        o = b.shape[1]
        return jnp.pad(b, ((0, 0), (0, _round_up(o, _LANE) - o))).astype(jnp.float32)

    return dict(
        w1=pad_w(p["w1"], pad_in=False), b1=pad_b(p["b1"]),
        w2=pad_w(p["w2"]), b2=pad_b(p["b2"]),
        w3=pad_w(p["w3"]), b3=pad_b(p["b3"]),
        wc=pad_w(p["wc"]), bc=pad_b(p["bc"]),
    )


def reference_forward(x, p):
    """Pure-JAX reference with the same bf16-operand / f32-accumulate numerics."""
    def lin(h, w, b):
        return jnp.dot(h.astype(jnp.bfloat16), w.astype(jnp.bfloat16),
                       preferred_element_type=jnp.float32) + b

    h = jnp.maximum(lin(x, p["w1"], p["b1"]), 0.0)
    h = jnp.maximum(lin(h, p["w2"], p["b2"]), 0.0)
    h = lin(h, p["w3"], p["b3"])
    return lin(h, p["wc"], p["bc"])


if __name__ == "__main__":
    # Small shapes consistent with the module: flattened features -> MLP head.
    B, D_IN = 8, 32
    HIDDEN_1, HIDDEN_2, HIDDEN_3 = 64, 48, 32
    NUM_CLASSES = 10

    key = jax.random.PRNGKey(0)
    kx, kp = jax.random.split(key)
    x = jax.random.normal(kx, (B, D_IN), jnp.float32)

    params_f32 = init_params(kp, D_IN, HIDDEN_1, HIDDEN_2, HIDDEN_3, NUM_CLASSES)
    params_kernel = pack_params(params_f32)

    # Small-batch run (single grid step, block == full batch).
    out = model_full_forward(x, params_kernel, num_classes=NUM_CLASSES)
    out = jax.block_until_ready(out)
    ref = reference_forward(x, params_f32)
    assert out.shape == (B, NUM_CLASSES)
    assert jnp.allclose(out, ref, atol=1e-3, rtol=1e-3), "mismatch vs reference (small batch)"

    # Larger, non-tile-multiple batch: exercises the >=2-step grid (both TCs on v7x)
    # and the masked partial last block (no batch padding anywhere).
    B2 = 500
    x2 = jax.random.normal(jax.random.PRNGKey(1), (B2, D_IN), jnp.float32)
    out2 = model_full_forward(x2, params_kernel, num_classes=NUM_CLASSES)
    out2 = jax.block_until_ready(out2)
    ref2 = reference_forward(x2, params_f32)
    assert out2.shape == (B2, NUM_CLASSES)
    assert jnp.allclose(out2, ref2, atol=1e-3, rtol=1e-3), "mismatch vs reference (large batch)"

    print("KERNEL_OK")
</pallas_src>

<mosaic_0001>
module attributes {stable_mosaic.version = 11 : i64} {
  func.func @_model_full_kernel(%arg0: i32, %arg1: memref<8x32xf32, #tpu.memory_space<vmem>>, %arg2: memref<32x128xbf16, #tpu.memory_space<vmem>>, %arg3: memref<1x128xf32, #tpu.memory_space<vmem>>, %arg4: memref<128x128xbf16, #tpu.memory_space<vmem>>, %arg5: memref<1x128xf32, #tpu.memory_space<vmem>>, %arg6: memref<128x128xbf16, #tpu.memory_space<vmem>>, %arg7: memref<1x128xf32, #tpu.memory_space<vmem>>, %arg8: memref<128x128xbf16, #tpu.memory_space<vmem>>, %arg9: memref<1x128xf32, #tpu.memory_space<vmem>>, %arg10: memref<8x128xf32, #tpu.memory_space<vmem>>) attributes {dimension_semantics = [#tpu.dimension_semantics<parallel>], iteration_bounds = array<i64: 1>, scalar_prefetch = 0 : i64, scratch_operands = 0 : i64, tpu.core_type = #tpu.core_type<tc>, window_params = [{transform_indices = @transform_0, window_bounds = array<i64: 8, 32>}, {pipeline_mode = #tpu.pipeline_mode<synchronous>, transform_indices = @transform_1, window_bounds = array<i64: 32, 128>}, {pipeline_mode = #tpu.pipeline_mode<synchronous>, transform_indices = @transform_2, window_bounds = array<i64: 1, 128>}, {pipeline_mode = #tpu.pipeline_mode<synchronous>, transform_indices = @transform_3, window_bounds = array<i64: 128, 128>}, {pipeline_mode = #tpu.pipeline_mode<synchronous>, transform_indices = @transform_4, window_bounds = array<i64: 1, 128>}, {pipeline_mode = #tpu.pipeline_mode<synchronous>, transform_indices = @transform_5, window_bounds = array<i64: 128, 128>}, {pipeline_mode = #tpu.pipeline_mode<synchronous>, transform_indices = @transform_6, window_bounds = array<i64: 1, 128>}, {pipeline_mode = #tpu.pipeline_mode<synchronous>, transform_indices = @transform_7, window_bounds = array<i64: 128, 128>}, {pipeline_mode = #tpu.pipeline_mode<synchronous>, transform_indices = @transform_8, window_bounds = array<i64: 1, 128>}, {transform_indices = @transform_9, window_bounds = array<i64: 8, 128>}]} {
    %c0 = arith.constant 0 : index
    %c0_0 = arith.constant 0 : index
    %0 = vector.load %arg1[%c0, %c0_0] : memref<8x32xf32, #tpu.memory_space<vmem>>, vector<8x32xf32>
    %1 = arith.truncf %0 : vector<8x32xf32> to vector<8x32xbf16>
    %c0_1 = arith.constant 0 : index
    %c0_2 = arith.constant 0 : index
    %2 = vector.load %arg3[%c0_1, %c0_2] : memref<1x128xf32, #tpu.memory_space<vmem>>, vector<1x128xf32>
    %c0_3 = arith.constant 0 : index
    %c0_4 = arith.constant 0 : index
    %3 = vector.load %arg5[%c0_3, %c0_4] : memref<1x128xf32, #tpu.memory_space<vmem>>, vector<1x128xf32>
    %c0_5 = arith.constant 0 : index
    %c0_6 = arith.constant 0 : index
    %4 = vector.load %arg7[%c0_5, %c0_6] : memref<1x128xf32, #tpu.memory_space<vmem>>, vector<1x128xf32>
    %c0_7 = arith.constant 0 : index
    %c0_8 = arith.constant 0 : index
    %5 = vector.load %arg9[%c0_7, %c0_8] : memref<1x128xf32, #tpu.memory_space<vmem>>, vector<1x128xf32>
    %c0_9 = arith.constant 0 : index
    %c0_10 = arith.constant 0 : index
    %6 = vector.load %arg2[%c0_9, %c0_10] : memref<32x128xbf16, #tpu.memory_space<vmem>>, vector<32x128xbf16>
    %cst = arith.constant dense<0.000000e+00> : vector<8x128xf32>
    %7 = tpu.matmul %1, %6, %cst {dimension_numbers = #tpu.dot_dimension_numbers<[1], [0], [0], [1], [0, 0, 1, 1], [], []>} : vector<8x32xbf16>, vector<32x128xbf16>, vector<8x128xf32> -> vector<8x128xf32>
    %8 = vector.broadcast %2 : vector<1x128xf32> to vector<8x128xf32>
    %9 = arith.addf %7, %8 : vector<8x128xf32>
    %cst_11 = arith.constant 0.000000e+00 : f32
    %10 = vector.broadcast %cst_11 : f32 to vector<8x128xf32>
    %11 = arith.maximumf %9, %10 : vector<8x128xf32>
    %12 = arith.truncf %11 : vector<8x128xf32> to vector<8x128xbf16>
    %c0_12 = arith.constant 0 : index
    %c0_13 = arith.constant 0 : index
    %13 = vector.load %arg4[%c0_12, %c0_13] : memref<128x128xbf16, #tpu.memory_space<vmem>>, vector<128x128xbf16>
    %cst_14 = arith.constant dense<0.000000e+00> : vector<8x128xf32>
    %14 = tpu.matmul %12, %13, %cst_14 {dimension_numbers = #tpu.dot_dimension_numbers<[1], [0], [0], [1], [0, 0, 1, 1], [], []>} : vector<8x128xbf16>, vector<128x128xbf16>, vector<8x128xf32> -> vector<8x128xf32>
    %15 = vector.broadcast %3 : vector<1x128xf32> to vector<8x128xf32>
    %16 = arith.addf %14, %15 : vector<8x128xf32>
    %cst_15 = arith.constant 0.000000e+00 : f32
    %17 = vector.broadcast %cst_15 : f32 to vector<8x128xf32>
    %18 = arith.maximumf %16, %17 : vector<8x128xf32>
    %19 = arith.truncf %18 : vector<8x128xf32> to vector<8x128xbf16>
    %c0_16 = arith.constant 0 : index
    %c0_17 = arith.constant 0 : index
    %20 = vector.load %arg6[%c0_16, %c0_17] : memref<128x128xbf16, #tpu.memory_space<vmem>>, vector<128x128xbf16>
    %cst_18 = arith.constant dense<0.000000e+00> : vector<8x128xf32>
    %21 = tpu.matmul %19, %20, %cst_18 {dimension_numbers = #tpu.dot_dimension_numbers<[1], [0], [0], [1], [0, 0, 1, 1], [], []>} : vector<8x128xbf16>, vector<128x128xbf16>, vector<8x128xf32> -> vector<8x128xf32>
    %22 = vector.broadcast %4 : vector<1x128xf32> to vector<8x128xf32>
    %23 = arith.addf %21, %22 : vector<8x128xf32>
    %24 = arith.truncf %23 : vector<8x128xf32> to vector<8x128xbf16>
    %c0_19 = arith.constant 0 : index
    %c0_20 = arith.constant 0 : index
    %25 = vector.load %arg8[%c0_19, %c0_20] : memref<128x128xbf16, #tpu.memory_space<vmem>>, vector<128x128xbf16>
    %cst_21 = arith.constant dense<0.000000e+00> : vector<8x128xf32>
    %26 = tpu.matmul %24, %25, %cst_21 {dimension_numbers = #tpu.dot_dimension_numbers<[1], [0], [0], [1], [0, 0, 1, 1], [], []>} : vector<8x128xbf16>, vector<128x128xbf16>, vector<8x128xf32> -> vector<8x128xf32>
    %27 = vector.broadcast %5 : vector<1x128xf32> to vector<8x128xf32>
    %28 = arith.addf %26, %27 : vector<8x128xf32>
    %c0_22 = arith.constant 0 : index
    %c0_23 = arith.constant 0 : index
    %29 = vector.load %arg10[%c0_22, %c0_23] : memref<8x128xf32, #tpu.memory_space<vmem>>, vector<8x128xf32>
    tpu.vector_store %arg10[%c0_22, %c0_23], %28 {strides = array<i32>} : memref<8x128xf32, #tpu.memory_space<vmem>>, vector<8x128xf32>,
    return
  }
  func.func @transform_0(%arg0: i32) -> (i32, i32) {
    %c0_i32 = arith.constant 0 : i32
    %c0_i32_0 = arith.constant 0 : i32
    return %arg0, %c0_i32 : i32, i32
  }
  func.func @transform_1(%arg0: i32) -> (i32, i32) {
    %c0_i32 = arith.constant 0 : i32
    %c0_i32_0 = arith.constant 0 : i32
    %c0_i32_1 = arith.constant 0 : i32
    return %c0_i32, %c0_i32_0 : i32, i32
  }
  func.func @transform_2(%arg0: i32) -> (i32, i32) {
    %c0_i32 = arith.constant 0 : i32
    %c0_i32_0 = arith.constant 0 : i32
    %c0_i32_1 = arith.constant 0 : i32
    return %c0_i32, %c0_i32_0 : i32, i32
  }
  func.func @transform_3(%arg0: i32) -> (i32, i32) {
    %c0_i32 = arith.constant 0 : i32
    %c0_i32_0 = arith.constant 0 : i32
    %c0_i32_1 = arith.constant 0 : i32
    return %c0_i32, %c0_i32_0 : i32, i32
  }
  func.func @transform_4(%arg0: i32) -> (i32, i32) {
    %c0_i32 = arith.constant 0 : i32
    %c0_i32_0 = arith.constant 0 : i32
    %c0_i32_1 = arith.constant 0 : i32
    return %c0_i32, %c0_i32_0 : i32, i32
  }
  func.func @transform_5(%arg0: i32) -> (i32, i32) {
    %c0_i32 = arith.constant 0 : i32
    %c0_i32_0 = arith.constant 0 : i32
    %c0_i32_1 = arith.constant 0 : i32
    return %c0_i32, %c0_i32_0 : i32, i32
  }
  func.func @transform_6(%arg0: i32) -> (i32, i32) {
    %c0_i32 = arith.constant 0 : i32
    %c0_i32_0 = arith.constant 0 : i32
    %c0_i32_1 = arith.constant 0 : i32
    return %c0_i32, %c0_i32_0 : i32, i32
  }
  func.func @transform_7(%arg0: i32) -> (i32, i32) {
    %c0_i32 = arith.constant 0 : i32
    %c0_i32_0 = arith.constant 0 : i32
    %c0_i32_1 = arith.constant 0 : i32
    return %c0_i32, %c0_i32_0 : i32, i32
  }
  func.func @transform_8(%arg0: i32) -> (i32, i32) {
    %c0_i32 = arith.constant 0 : i32
    %c0_i32_0 = arith.constant 0 : i32
    %c0_i32_1 = arith.constant 0 : i32
    return %c0_i32, %c0_i32_0 : i32, i32
  }
  func.func @transform_9(%arg0: i32) -> (i32, i32) {
    %c0_i32 = arith.constant 0 : i32
    %c0_i32_0 = arith.constant 0 : i32
    return %arg0, %c0_i32 : i32, i32
  }
}

</mosaic_0001>

<llo_original>
// kernel: model_full_forward.1
$region0: #{model_full_forward.1}
  #allocation0 [shape = 'u32[]', space=smem, size = 0x4, offset = 0x4, fixed_abs, tag = 'smem constant byte address 0x4 - core index']
  #allocation1 [shape = 'u32[144,128]{1,0:T(1,128)}', space=vmem, size = 0x12000, scoped, tag = 'internal scratch']
  %s0 = inlined_call_operand.hbm [shape: f32[8,32], index: 0, kind: input, shape index: {}]
  %s1 = inlined_call_operand.vmem [shape: bf16[32,128], index: 1, kind: input, shape index: {}]
  %s2 = inlined_call_operand.vmem [shape: f32[1,128], index: 2, kind: input, shape index: {}]
  %s3 = inlined_call_operand.hbm [shape: bf16[128,128], index: 3, kind: input, shape index: {}]
  %s4 = inlined_call_operand.vmem [shape: f32[1,128], index: 4, kind: input, shape index: {}]
  %s5 = inlined_call_operand.hbm [shape: bf16[128,128], index: 5, kind: input, shape index: {}]
  %s6 = inlined_call_operand.hbm [shape: f32[1,128], index: 6, kind: input, shape index: {}]
  %s7 = inlined_call_operand.hbm [shape: bf16[128,128], index: 7, kind: input, shape index: {}]
  %s8 = inlined_call_operand.hbm [shape: f32[1,128], index: 8, kind: input, shape index: {}]
  %s9 = inlined_call_operand.hbm [shape: f32[8,128], index: 9, kind: output, shape index: {}]
  %s10 = sld [smem:[#allocation0]]
  $region70: #{model_full_forward.1} parent=0
    _
  %s12 = ssub.s32 1, %s10
  %s13 = scalar_select 0, %s12, %s10
  $region1: #{model_full_forward.1} parent=0
    #allocation2 [shape = 'u8[4096]{0}', space=vmem, size = 0x1000, scoped, tag = 'input window, operand 0, single buffered']
    #allocation3 [shape = 's32[1]{0}', space=sflag, size = 0x4, scoped, tag = 'scoped memory for model_full_forward.1']
    #allocation4 [shape = 's32[1]{0}', space=sflag, size = 0x4, scoped, tag = 'scoped memory for model_full_forward.1']
    #allocation5 [shape = 'u8[32768]{0}', space=vmem, size = 0x8000, scoped, tag = 'input window, operand 3, single buffered']
    #allocation6 [shape = 's32[1]{0}', space=sflag, size = 0x4, scoped, tag = 'scoped memory for model_full_forward.1']
    #allocation7 [shape = 'u8[32768]{0}', space=vmem, size = 0x8000, scoped, tag = 'input window, operand 5, single buffered']
    #allocation8 [shape = 'u8[512]{0}', space=vmem, size = 0x400, scoped, tag = 'input window, operand 6, single buffered']
    #allocation9 [shape = 's32[1]{0}', space=sflag, size = 0x4, scoped, tag = 'scoped memory for model_full_forward.1']
    #allocation10 [shape = 'u8[32768]{0}', space=vmem, size = 0x8000, scoped, tag = 'input window, operand 7, single buffered']
    #allocation11 [shape = 'u8[512]{0}', space=vmem, size = 0x400, scoped, tag = 'input window, operand 8, single buffered']
    #allocation12 [shape = 's32[1]{0}', space=sflag, size = 0x4, scoped, tag = 'scoped memory for model_full_forward.1']
    #allocation13 [shape = 'u8[4096]{0}', space=vmem, size = 0x1000, scoped, tag = 'output window, operand 0, single buffered']
    %14 = vsyncpa [#allocation3], 0
    %15 = vsyncpa [#allocation6], 0
    %16 = vsyncpa [#allocation9], 0
    %17 = vsyncpa [#allocation12], 0
    %18 = vsyncpa [#allocation4], 0
    // Predicated region
    $region2: #{model_full_forward.1} parent=1 // pred_check
      _
    $region3: #{model_full_forward.1} parent=1 // pred_check_branch
      %20 = sbr.rel (0) target = $region5
    $region4: #{model_full_forward.1} parent=1 // pred_region
      %s22 = ssub.s32 128, 128
      %23 = vsyncadd [#allocation3], %s22
      %s25 = sshll.u32 [#allocation2], 4
      %s26 = int_to_ptr.vmem [resolvable:$true] %s25
      %28 = dma.hbm_to_vmem [thread:$0]  %s0, 128, %s26, [#allocation3]
    $region5: #{model_full_forward.1} parent=1 // pred_fallthru
      _
    // Predicated region
    $region6: #{model_full_forward.1} parent=1 // pred_check
      _
    $region7: #{model_full_forward.1} parent=1 // pred_check_branch
      %30 = sbr.rel (0) target = $region9
    $region8: #{model_full_forward.1} parent=1 // pred_region
      _
    $region9: #{model_full_forward.1} parent=1 // pred_fallthru
      _
    // Predicated region
    $region10: #{model_full_forward.1} parent=1 // pred_check
      _
    $region11: #{model_full_forward.1} parent=1 // pred_check_branch
      %32 = sbr.rel (0) target = $region13
    $region12: #{model_full_forward.1} parent=1 // pred_region
      _
    $region13: #{model_full_forward.1} parent=1 // pred_fallthru
      _
    // Predicated region
    $region14: #{model_full_forward.1} parent=1 // pred_check
      _
    $region15: #{model_full_forward.1} parent=1 // pred_check_branch
      %34 = sbr.rel (0) target = $region17
    $region16: #{model_full_forward.1} parent=1 // pred_region
      %s36 = ssub.s32 1024, 1024
      %37 = vsyncadd [#allocation6], %s36
      %s38 = sshll.u32 [#allocation5], 4
      %s39 = int_to_ptr.vmem [resolvable:$true] %s38
      %44 = dma.hbm_to_vmem [thread:$0]  %s3, 1024, %s39, [#allocation6], 64, 64, 4
    $region17: #{model_full_forward.1} parent=1 // pred_fallthru
      _
    // Predicated region
    $region18: #{model_full_forward.1} parent=1 // pred_check
      _
    $region19: #{model_full_forward.1} parent=1 // pred_check_branch
      %46 = sbr.rel (0) target = $region21
    $region20: #{model_full_forward.1} parent=1 // pred_region
      _
    $region21: #{model_full_forward.1} parent=1 // pred_fallthru
      _
    // Predicated region
    $region22: #{model_full_forward.1} parent=1 // pred_check
      _
    $region23: #{model_full_forward.1} parent=1 // pred_check_branch
      %48 = sbr.rel (0) target = $region25
    $region24: #{model_full_forward.1} parent=1 // pred_region
      %s50 = ssub.s32 1024, 1024
      %51 = vsyncadd [#allocation6], %s50
      %s52 = sshll.u32 [#allocation7], 4
      %s53 = int_to_ptr.vmem [resolvable:$true] %s52
      %58 = dma.hbm_to_vmem [thread:$0]  %s5, 1024, %s53, [#allocation6], 64, 64, 4
    $region25: #{model_full_forward.1} parent=1 // pred_fallthru
      _
    // Predicated region
    $region26: #{model_full_forward.1} parent=1 // pred_check
      _
    $region27: #{model_full_forward.1} parent=1 // pred_check_branch
      %60 = sbr.rel (0) target = $region29
    $region28: #{model_full_forward.1} parent=1 // pred_region
      %s62 = ssub.s32 16, 16
      %63 = vsyncadd [#allocation9], %s62
      %s65 = sshll.u32 [#allocation8], 4
      %s66 = int_to_ptr.vmem [resolvable:$true] %s65
      %68 = dma.hbm_to_vmem [thread:$0]  %s6, 16, %s66, [#allocation9]
    $region29: #{model_full_forward.1} parent=1 // pred_fallthru
      _
    // Predicated region
    $region30: #{model_full_forward.1} parent=1 // pred_check
      _
    $region31: #{model_full_forward.1} parent=1 // pred_check_branch
      %70 = sbr.rel (0) target = $region33
    $region32: #{model_full_forward.1} parent=1 // pred_region
      %s72 = ssub.s32 1024, 1024
      %73 = vsyncadd [#allocation9], %s72
      %s74 = sshll.u32 [#allocation10], 4
      %s75 = int_to_ptr.vmem [resolvable:$true] %s74
      %80 = dma.hbm_to_vmem [thread:$0]  %s7, 1024, %s75, [#allocation9], 64, 64, 4
    $region33: #{model_full_forward.1} parent=1 // pred_fallthru
      _
    // Predicated region
    $region34: #{model_full_forward.1} parent=1 // pred_check
      _
    $region35: #{model_full_forward.1} parent=1 // pred_check_branch
      %82 = sbr.rel (0) target = $region37
    $region36: #{model_full_forward.1} parent=1 // pred_region
      %s84 = ssub.s32 16, 16
      %85 = vsyncadd [#allocation12], %s84
      %s87 = sshll.u32 [#allocation11], 4
      %s88 = int_to_ptr.vmem [resolvable:$true] %s87
      %90 = dma.hbm_to_vmem [thread:$0]  %s8, 16, %s88, [#allocation12]
    $region37: #{model_full_forward.1} parent=1 // pred_fallthru
      _
    // Predicated region
    $region38: #{model_full_forward.1} parent=1 // pred_check
      _
    $region39: #{model_full_forward.1} parent=1 // pred_check_branch
      %92 = sbr.rel (0) target = $region41
    $region40: #{model_full_forward.1} parent=1 // pred_region
      %93 = dma.done [#allocation3], 128
    $region41: #{model_full_forward.1} parent=1 // pred_fallthru
      _
    // Predicated region
    $region42: #{model_full_forward.1} parent=1 // pred_check
      _
    $region43: #{model_full_forward.1} parent=1 // pred_check_branch
      %95 = sbr.rel (0) target = $region45
    $region44: #{model_full_forward.1} parent=1 // pred_region
      %96 = dma.done [#allocation6], 1024
    $region45: #{model_full_forward.1} parent=1 // pred_fallthru
      _
    // Predicated region
    $region46: #{model_full_forward.1} parent=1 // pred_check
      _
    $region47: #{model_full_forward.1} parent=1 // pred_check_branch
      %98 = sbr.rel (0) target = $region49
    $region48: #{model_full_forward.1} parent=1 // pred_region
      %99 = dma.done [#allocation6], 1024
    $region49: #{model_full_forward.1} parent=1 // pred_fallthru
      _
    // Predicated region
    $region50: #{model_full_forward.1} parent=1 // pred_check
      _
    $region51: #{model_full_forward.1} parent=1 // pred_check_branch
      %101 = sbr.rel (0) target = $region53
    $region52: #{model_full_forward.1} parent=1 // pred_region
      %102 = dma.done [#allocation9], 16
    $region53: #{model_full_forward.1} parent=1 // pred_fallthru
      _
    // Predicated region
    $region54: #{model_full_forward.1} parent=1 // pred_check
      _
    $region55: #{model_full_forward.1} parent=1 // pred_check_branch
      %104 = sbr.rel (0) target = $region57
    $region56: #{model_full_forward.1} parent=1 // pred_region
      %105 = dma.done [#allocation9], 1024
    $region57: #{model_full_forward.1} parent=1 // pred_fallthru
      _
    // Predicated region
    $region58: #{model_full_forward.1} parent=1 // pred_check
      _
    $region59: #{model_full_forward.1} parent=1 // pred_check_branch
      %107 = sbr.rel (0) target = $region61
    $region60: #{model_full_forward.1} parent=1 // pred_region
      %108 = dma.done [#allocation12], 16
    $region61: #{model_full_forward.1} parent=1 // pred_fallthru
      _
    %v110 = vld [vmem:[#allocation2] sm:$0xff]
    %v111 = vpack.c.bf16 %v110, %v110
    %v112 = vld [vmem:[%s2] sm:$0x1]
    %v113 = vld [vmem:[%s4] sm:$0x1]
    %v114 = vld [vmem:[#allocation8] sm:$0x1]
    %v115 = vld [vmem:[#allocation11] sm:$0x1]
    %v116 = vld [vmem:[%s1] sm:$0xf]
    %v117 = vld [vmem:[%s1 + $0x4] sm:$0xf]
    %v118 = vld [vmem:[%s1 + $0x8] sm:$0xf]
    %v119 = vld [vmem:[%s1 + $0xc] sm:$0xf]
    %v121 = vlaneseq
    %v122 = vshrl.u32 %v121, 7
    %v123 = vsub.s32 0, %v122
    %v124 = vrot.slane %v112, %v123
    %v130 = vunpack.c.l.b16 %v116
    %v131 = vunpack.c.l.b16 %v117
    %v132 = vunpack.c.l.b16 %v118
    %v133 = vunpack.c.l.b16 %v119
    %v134 = vpack.c.b16 %v131, %v130
    %v135 = vpack.c.b16 %v133, %v132
    %vm138 = vcmask 261120
    %v140 = vsel %vm138, %v111, 0
    %142 = vmatprep.subr.bf16.mxu0 0
    %143 = vmatpush1.bf16.msra.mxu0 %v134
    %144 = vmatprep.subr.bf16.mxu0 0
    %145 = vmatpush1.bf16.msra.mxu0 %v135
    %146 = vmatprep.subr.bf16.mxu0 0
    %147 = vmatpush1.bf16.msra.mxu0 0
    %148 = vmatprep.subr.bf16.mxu0 0
    %149 = vmatpush1.bf16.msra.mxu0 0
    %150 = vmatprep.subr.bf16.mxu0 0
    %151 = vmatpush1.bf16.msra.mxu0 0
    %152 = vmatprep.subr.bf16.mxu0 0
    %153 = vmatpush1.bf16.msra.mxu0 0
    %154 = vmatprep.subr.bf16.mxu0 0
    %155 = vmatpush1.bf16.msra.mxu0 0
    %156 = vmatprep.subr.bf16.mxu0 0
    %157 = vmatpush1.bf16.msra.mxu0 0
    %158 = vmatprep.subr.bf16.mxu0 0
    %159 = vmatpush1.bf16.msra.mxu0 0
    %160 = vmatprep.subr.bf16.mxu0 0
    %161 = vmatpush1.bf16.msra.mxu0 0
    %162 = vmatprep.subr.bf16.mxu0 0
    %163 = vmatpush1.bf16.msra.mxu0 0
    %164 = vmatprep.subr.bf16.mxu0 0
    %165 = vmatpush1.bf16.msra.mxu0 0
    %166 = vmatprep.subr.bf16.mxu0 0
    %167 = vmatpush1.bf16.msra.mxu0 0
    %168 = vmatprep.subr.bf16.mxu0 0
    %169 = vmatpush1.bf16.msra.mxu0 0
    %170 = vmatprep.subr.bf16.mxu0 0
    %171 = vmatpush1.bf16.msra.mxu0 0
    %172 = vmatprep.subr.bf16.mxu0 0
    %173 = vmatpush1.bf16.msra.mxu0 0
    %174 = vmatprep.mubr.bf16.mxu0 0
    %175 = vmatmul.mubr.bf16.gmra.mrb[0].mxu0 %v140
    %v176 = vpop.f32.mrb[0].mxu0
    %v177 = vadd.f32 %v124, %v176
    %v178 = vpop.f32.mrb[0].mxu0
    %v179 = vpop.f32.mrb[0].mxu0
    %v180 = vpop.f32.mrb[0].mxu0
    %181 = vdwg.mxu0
    %v182 = vmax.f32 %v177, 0.0
    %v183 = vpack.c.bf16 %v182, %v182
    %v184 = vld [vmem:[#allocation5] sm:$0xf]
    %v185 = vld [vmem:[#allocation5 + $0x4] sm:$0xf]
    %v186 = vld [vmem:[#allocation5 + $0x8] sm:$0xf]
    %v187 = vld [vmem:[#allocation5 + $0xc] sm:$0xf]
    %v188 = vld [vmem:[#allocation5 + $0x10] sm:$0xf]
    %v189 = vld [vmem:[#allocation5 + $0x14] sm:$0xf]
    %v190 = vld [vmem:[#allocation5 + $0x18] sm:$0xf]
    %v191 = vld [vmem:[#allocation5 + $0x1c] sm:$0xf]
    %v192 = vld [vmem:[#allocation5 + $0x20] sm:$0xf]
    %v193 = vld [vmem:[#allocation5 + $0x24] sm:$0xf]
    %v194 = vld [vmem:[#allocation5 + $0x28] sm:$0xf]
    %v195 = vld [vmem:[#allocation5 + $0x2c] sm:$0xf]
    %v196 = vld [vmem:[#allocation5 + $0x30] sm:$0xf]
    %v197 = vld [vmem:[#allocation5 + $0x34] sm:$0xf]
    %v198 = vld [vmem:[#allocation5 + $0x38] sm:$0xf]
    %v199 = vld [vmem:[#allocation5 + $0x3c] sm:$0xf]
    %v201 = vlaneseq
    %v202 = vshrl.u32 %v201, 7
    %v203 = vsub.s32 0, %v202
    %v204 = vrot.slane %v113, %v203
    %v222 = vunpack.c.l.b16 %v184
    %v223 = vunpack.c.l.b16 %v185
    %v224 = vunpack.c.l.b16 %v186
    %v225 = vunpack.c.l.b16 %v187
    %v226 = vunpack.c.l.b16 %v188
    %v227 = vunpack.c.l.b16 %v189
    %v228 = vunpack.c.l.b16 %v190
    %v229 = vunpack.c.l.b16 %v191
    %v230 = vunpack.c.l.b16 %v192
    %v231 = vunpack.c.l.b16 %v193
    %v232 = vunpack.c.l.b16 %v194
    %v233 = vunpack.c.l.b16 %v195
    %v234 = vunpack.c.l.b16 %v196
    %v235 = vunpack.c.l.b16 %v197
    %v236 = vunpack.c.l.b16 %v198
    %v237 = vunpack.c.l.b16 %v199
    %v238 = vpack.c.b16 %v223, %v222
    %v239 = vpack.c.b16 %v225, %v224
    %v240 = vpack.c.b16 %v227, %v226
    %v241 = vpack.c.b16 %v229, %v228
    %v242 = vpack.c.b16 %v231, %v230
    %v243 = vpack.c.b16 %v233, %v232
    %v244 = vpack.c.b16 %v235, %v234
    %v245 = vpack.c.b16 %v237, %v236
    %254 = vmatprep.subr.bf16.mxu0 0
    %255 = vmatpush1.bf16.msra.mxu0 %v238
    %256 = vmatprep.subr.bf16.mxu0 0
    %257 = vmatpush1.bf16.msra.mxu0 %v239
    %258 = vmatprep.subr.bf16.mxu0 0
    %259 = vmatpush1.bf16.msra.mxu0 %v240
    %260 = vmatprep.subr.bf16.mxu0 0
    %261 = vmatpush1.bf16.msra.mxu0 %v241
    %262 = vmatprep.subr.bf16.mxu0 0
    %263 = vmatpush1.bf16.msra.mxu0 %v242
    %264 = vmatprep.subr.bf16.mxu0 0
    %265 = vmatpush1.bf16.msra.mxu0 %v243
    %266 = vmatprep.subr.bf16.mxu0 0
    %267 = vmatpush1.bf16.msra.mxu0 %v244
    %268 = vmatprep.subr.bf16.mxu0 0
    %269 = vmatpush1.bf16.msra.mxu0 %v245
    %270 = vmatprep.subr.bf16.mxu0 0
    %271 = vmatpush1.bf16.msra.mxu0 0
    %272 = vmatprep.subr.bf16.mxu0 0
    %273 = vmatpush1.bf16.msra.mxu0 0
    %274 = vmatprep.subr.bf16.mxu0 0
    %275 = vmatpush1.bf16.msra.mxu0 0
    %276 = vmatprep.subr.bf16.mxu0 0
    %277 = vmatpush1.bf16.msra.mxu0 0
    %278 = vmatprep.subr.bf16.mxu0 0
    %279 = vmatpush1.bf16.msra.mxu0 0
    %280 = vmatprep.subr.bf16.mxu0 0
    %281 = vmatpush1.bf16.msra.mxu0 0
    %282 = vmatprep.subr.bf16.mxu0 0
    %283 = vmatpush1.bf16.msra.mxu0 0
    %284 = vmatprep.subr.bf16.mxu0 0
    %285 = vmatpush1.bf16.msra.mxu0 0
    %286 = vmatprep.mubr.bf16.mxu0 0
    %287 = vmatmul.mubr.bf16.gmra.mrb[0].mxu0 %v183
    %v288 = vpop.f32.mrb[0].mxu0
    %v289 = vadd.f32 %v204, %v288
    %v290 = vpop.f32.mrb[0].mxu0
    %v291 = vpop.f32.mrb[0].mxu0
    %v292 = vpop.f32.mrb[0].mxu0
    %293 = vdwg.mxu0
    %v294 = vmax.f32 %v289, 0.0
    %v295 = vpack.c.bf16 %v294, %v294
    %v296 = vld [vmem:[#allocation7] sm:$0xf]
    %v297 = vld [vmem:[#allocation7 + $0x4] sm:$0xf]
    %v298 = vld [vmem:[#allocation7 + $0x8] sm:$0xf]
    %v299 = vld [vmem:[#allocation7 + $0xc] sm:$0xf]
    %v300 = vld [vmem:[#allocation7 + $0x10] sm:$0xf]
    %v301 = vld [vmem:[#allocation7 + $0x14] sm:$0xf]
    %v302 = vld [vmem:[#allocation7 + $0x18] sm:$0xf]
    %v303 = vld [vmem:[#allocation7 + $0x1c] sm:$0xf]
    %v304 = vld [vmem:[#allocation7 + $0x20] sm:$0xf]
    %v305 = vld [vmem:[#allocation7 + $0x24] sm:$0xf]
    %v306 = vld [vmem:[#allocation7 + $0x28] sm:$0xf]
    %v307 = vld [vmem:[#allocation7 + $0x2c] sm:$0xf]
    %v308 = vld [vmem:[#allocation7 + $0x30] sm:$0xf]
    %v309 = vld [vmem:[#allocation7 + $0x34] sm:$0xf]
    %v310 = vld [vmem:[#allocation7 + $0x38] sm:$0xf]
    %v311 = vld [vmem:[#allocation7 + $0x3c] sm:$0xf]
    %v313 = vlaneseq
    %v314 = vshrl.u32 %v313, 7
    %v315 = vsub.s32 0, %v314
    %v316 = vrot.slane %v114, %v315
    %v334 = vunpack.c.l.b16 %v296
    %v335 = vunpack.c.l.b16 %v297
    %v336 = vunpack.c.l.b16 %v298
    %v337 = vunpack.c.l.b16 %v299
    %v338 = vunpack.c.l.b16 %v300
    %v339 = vunpack.c.l.b16 %v301
    %v340 = vunpack.c.l.b16 %v302
    %v341 = vunpack.c.l.b16 %v303
    %v342 = vunpack.c.l.b16 %v304
    %v343 = vunpack.c.l.b16 %v305
    %v344 = vunpack.c.l.b16 %v306
    %v345 = vunpack.c.l.b16 %v307
    %v346 = vunpack.c.l.b16 %v308
    %v347 = vunpack.c.l.b16 %v309
    %v348 = vunpack.c.l.b16 %v310
    %v349 = vunpack.c.l.b16 %v311
    %v350 = vpack.c.b16 %v335, %v334
    %v351 = vpack.c.b16 %v337, %v336
    %v352 = vpack.c.b16 %v339, %v338
    %v353 = vpack.c.b16 %v341, %v340
    %v354 = vpack.c.b16 %v343, %v342
    %v355 = vpack.c.b16 %v345, %v344
    %v356 = vpack.c.b16 %v347, %v346
    %v357 = vpack.c.b16 %v349, %v348
    %366 = vmatprep.subr.bf16.mxu0 0
    %367 = vmatpush1.bf16.msra.mxu0 %v350
    %368 = vmatprep.subr.bf16.mxu0 0
    %369 = vmatpush1.bf16.msra.mxu0 %v351
    %370 = vmatprep.subr.bf16.mxu0 0
    %371 = vmatpush1.bf16.msra.mxu0 %v352
    %372 = vmatprep.subr.bf16.mxu0 0
    %373 = vmatpush1.bf16.msra.mxu0 %v353
    %374 = vmatprep.subr.bf16.mxu0 0
    %375 = vmatpush1.bf16.msra.mxu0 %v354
    %376 = vmatprep.subr.bf16.mxu0 0
    %377 = vmatpush1.bf16.msra.mxu0 %v355
    %378 = vmatprep.subr.bf16.mxu0 0
    %379 = vmatpush1.bf16.msra.mxu0 %v356
    %380 = vmatprep.subr.bf16.mxu0 0
    %381 = vmatpush1.bf16.msra.mxu0 %v357
    %382 = vmatprep.subr.bf16.mxu0 0
    %383 = vmatpush1.bf16.msra.mxu0 0
    %384 = vmatprep.subr.bf16.mxu0 0
    %385 = vmatpush1.bf16.msra.mxu0 0
    %386 = vmatprep.subr.bf16.mxu0 0
    %387 = vmatpush1.bf16.msra.mxu0 0
    %388 = vmatprep.subr.bf16.mxu0 0
    %389 = vmatpush1.bf16.msra.mxu0 0
    %390 = vmatprep.subr.bf16.mxu0 0
    %391 = vmatpush1.bf16.msra.mxu0 0
    %392 = vmatprep.subr.bf16.mxu0 0
    %393 = vmatpush1.bf16.msra.mxu0 0
    %394 = vmatprep.subr.bf16.mxu0 0
    %395 = vmatpush1.bf16.msra.mxu0 0
    %396 = vmatprep.subr.bf16.mxu0 0
    %397 = vmatpush1.bf16.msra.mxu0 0
    %398 = vmatprep.mubr.bf16.mxu0 0
    %399 = vmatmul.mubr.bf16.gmra.mrb[0].mxu0 %v295
    %v400 = vpop.f32.mrb[0].mxu0
    %v401 = vadd.f32 %v316, %v400
    %v402 = vpop.f32.mrb[0].mxu0
    %v403 = vpop.f32.mrb[0].mxu0
    %v404 = vpop.f32.mrb[0].mxu0
    %405 = vdwg.mxu0
    %v406 = vpack.c.bf16 %v401, %v401
    %v407 = vld [vmem:[#allocation10] sm:$0xf]
    %v408 = vld [vmem:[#allocation10 + $0x4] sm:$0xf]
    %v409 = vld [vmem:[#allocation10 + $0x8] sm:$0xf]
    %v410 = vld [vmem:[#allocation10 + $0xc] sm:$0xf]
    %v411 = vld [vmem:[#allocation10 + $0x10] sm:$0xf]
    %v412 = vld [vmem:[#allocation10 + $0x14] sm:$0xf]
    %v413 = vld [vmem:[#allocation10 + $0x18] sm:$0xf]
    %v414 = vld [vmem:[#allocation10 + $0x1c] sm:$0xf]
    %v415 = vld [vmem:[#allocation10 + $0x20] sm:$0xf]
    %v416 = vld [vmem:[#allocation10 + $0x24] sm:$0xf]
    %v417 = vld [vmem:[#allocation10 + $0x28] sm:$0xf]
    %v418 = vld [vmem:[#allocation10 + $0x2c] sm:$0xf]
    %v419 = vld [vmem:[#allocation10 + $0x30] sm:$0xf]
    %v420 = vld [vmem:[#allocation10 + $0x34] sm:$0xf]
    %v421 = vld [vmem:[#allocation10 + $0x38] sm:$0xf]
    %v422 = vld [vmem:[#allocation10 + $0x3c] sm:$0xf]
    %v424 = vlaneseq
    %v425 = vshrl.u32 %v424, 7
    %v426 = vsub.s32 0, %v425
    %v427 = vrot.slane %v115, %v426
    %v445 = vunpack.c.l.b16 %v407
    %v446 = vunpack.c.l.b16 %v408
    %v447 = vunpack.c.l.b16 %v409
    %v448 = vunpack.c.l.b16 %v410
    %v449 = vunpack.c.l.b16 %v411
    %v450 = vunpack.c.l.b16 %v412
    %v451 = vunpack.c.l.b16 %v413
    %v452 = vunpack.c.l.b16 %v414
    %v453 = vunpack.c.l.b16 %v415
    %v454 = vunpack.c.l.b16 %v416
    %v455 = vunpack.c.l.b16 %v417
    %v456 = vunpack.c.l.b16 %v418
    %v457 = vunpack.c.l.b16 %v419
    %v458 = vunpack.c.l.b16 %v420
    %v459 = vunpack.c.l.b16 %v421
    %v460 = vunpack.c.l.b16 %v422
    %v461 = vpack.c.b16 %v446, %v445
    %v462 = vpack.c.b16 %v448, %v447
    %v463 = vpack.c.b16 %v450, %v449
    %v464 = vpack.c.b16 %v452, %v451
    %v465 = vpack.c.b16 %v454, %v453
    %v466 = vpack.c.b16 %v456, %v455
    %v467 = vpack.c.b16 %v458, %v457
    %v468 = vpack.c.b16 %v460, %v459
    %477 = vmatprep.subr.bf16.mxu0 0
    %478 = vmatpush1.bf16.msra.mxu0 %v461
    %479 = vmatprep.subr.bf16.mxu0 0
    %480 = vmatpush1.bf16.msra.mxu0 %v462
    %481 = vmatprep.subr.bf16.mxu0 0
    %482 = vmatpush1.bf16.msra.mxu0 %v463
    %483 = vmatprep.subr.bf16.mxu0 0
    %484 = vmatpush1.bf16.msra.mxu0 %v464
    %485 = vmatprep.subr.bf16.mxu0 0
    %486 = vmatpush1.bf16.msra.mxu0 %v465
    %487 = vmatprep.subr.bf16.mxu0 0
    %488 = vmatpush1.bf16.msra.mxu0 %v466
    %489 = vmatprep.subr.bf16.mxu0 0
    %490 = vmatpush1.bf16.msra.mxu0 %v467
    %491 = vmatprep.subr.bf16.mxu0 0
    %492 = vmatpush1.bf16.msra.mxu0 %v468
    %493 = vmatprep.subr.bf16.mxu0 0
    %494 = vmatpush1.bf16.msra.mxu0 0
    %495 = vmatprep.subr.bf16.mxu0 0
    %496 = vmatpush1.bf16.msra.mxu0 0
    %497 = vmatprep.subr.bf16.mxu0 0
    %498 = vmatpush1.bf16.msra.mxu0 0
    %499 = vmatprep.subr.bf16.mxu0 0
    %500 = vmatpush1.bf16.msra.mxu0 0
    %501 = vmatprep.subr.bf16.mxu0 0
    %502 = vmatpush1.bf16.msra.mxu0 0
    %503 = vmatprep.subr.bf16.mxu0 0
    %504 = vmatpush1.bf16.msra.mxu0 0
    %505 = vmatprep.subr.bf16.mxu0 0
    %506 = vmatpush1.bf16.msra.mxu0 0
    %507 = vmatprep.subr.bf16.mxu0 0
    %508 = vmatpush1.bf16.msra.mxu0 0
    %509 = vmatprep.mubr.bf16.mxu0 0
    %510 = vmatmul.mubr.bf16.gmra.mrb[0].mxu0 %v406
    %v511 = vpop.f32.mrb[0].mxu0
    %v512 = vadd.f32 %v427, %v511
    %v513 = vpop.f32.mrb[0].mxu0
    %v514 = vpop.f32.mrb[0].mxu0
    %v515 = vpop.f32.mrb[0].mxu0
    %516 = vdwg.mxu0
    %517 = vst [vmem:[#allocation13] sm:$0xff] %v512
    // Predicated region
    $region62: #{model_full_forward.1} parent=1 // pred_check
      _
    $region63: #{model_full_forward.1} parent=1 // pred_check_branch
      %519 = sbr.rel (0) target = $region65
    $region64: #{model_full_forward.1} parent=1 // pred_region
      %s521 = ssub.s32 128, 128
      %522 = vsyncadd [#allocation4], %s521
      %s524 = sshll.u32 [#allocation13], 4
      %s525 = int_to_ptr.vmem [resolvable:$true] %s524
      %527 = dma.vmem_to_hbm [thread:$0]  %s525, 128, %s9, [#allocation4]
    $region65: #{model_full_forward.1} parent=1 // pred_fallthru
      _
    // Predicated region
    $region66: #{model_full_forward.1} parent=1 // pred_check
      _
    $region67: #{model_full_forward.1} parent=1 // pred_check_branch
      %529 = sbr.rel (0) target = $region69
    $region68: #{model_full_forward.1} parent=1 // pred_region
      %530 = dma.done [#allocation4], 128
    $region69: #{model_full_forward.1} parent=1 // pred_fallthru
      _
    %531 = vsyncpa [#allocation3], 1
    %532 = vsyncpa [#allocation6], 1
    %533 = vsyncpa [#allocation9], 1
    %534 = vsyncpa [#allocation12], 1
    %535 = vsyncpa [#allocation4], 1

</llo_original>
